<compile_context>
chip_gen: v7x
topology: tpu7x:2x2x1
jax: 0.10.0
libtpu: 0.0.40
codegen_flags: <defaults>
</compile_context>

<pallas_src>
import math
import functools

import jax
import jax.numpy as jnp
from jax.experimental import pallas as pl
from jax.experimental.pallas import tpu as pltpu


NEG_INF = float(jnp.finfo(jnp.float32).min)   # HF-style large-negative mask value


def _tile(dim, target, align):
    """Largest `align`-aligned divisor of `dim` that is <= target (or the full dim)."""
    if dim <= target:
        return dim
    t = (target // align) * align
    while t >= align:
        if dim % t == 0:
            return t
        t -= align
    return dim


# --------------------- fused QKV projection (head-major output) ---------------------

def _qkv_kernel(x_ref, w_ref, o_ref, acc_ref):
    @pl.when(pl.program_id(3) == 0)
    def _init():
        acc_ref[...] = jnp.zeros_like(acc_ref)

    acc_ref[...] += jnp.dot(x_ref[...], w_ref[0],
                            preferred_element_type=jnp.float32)

    @pl.when(pl.program_id(3) == pl.num_programs(3) - 1)
    def _done():
        o_ref[...] = acc_ref[...][None, None].astype(o_ref.dtype)


def pallas_qkv_proj(x2d, wqkv3, batch, seq, *, tm_target=256, tk_target=512):
    """x2d: (B*S, H); wqkv3: (NHX, H, D) -> qkv in head-major layout (B, NHX, S, D)."""
    M, K = x2d.shape
    NHX, K2, D = wqkv3.shape
    assert K == K2 and M == batch * seq
    tm = _tile(seq, tm_target, 8)
    tk = _tile(K, tk_target, 128)
    s_blocks = seq // tm
    return pl.pallas_call(
        _qkv_kernel,
        out_shape=jax.ShapeDtypeStruct((batch, NHX, seq, D), x2d.dtype),
        grid=(batch, s_blocks, NHX, K // tk),
        in_specs=[
            pl.BlockSpec((tm, tk), lambda b, si, h, k: (b * s_blocks + si, k)),
            pl.BlockSpec((1, tk, D), lambda b, si, h, k: (h, 0, k)),
        ],
        out_specs=pl.BlockSpec((1, 1, tm, D), lambda b, si, h, k: (b, h, si, 0)),
        scratch_shapes=[pltpu.VMEM((tm, D), jnp.float32)],
        compiler_params=pltpu.CompilerParams(
            dimension_semantics=("parallel", "parallel", "parallel", "arbitrary")),
    )(x2d, wqkv3)


# ----------------------------- RoPE (+ key-scale) pre-pass -----------------------------

def _rope_kernel(x_ref, cos_ref, sin_ref, scale_ref, rot_ref, o_ref, *, out_scale):
    xf = x_ref[0, 0].astype(jnp.float32)        # (ts, D)
    cos = cos_ref[0]                            # (ts, D) f32
    sin = sin_ref[0]                            # (ts, D) f32
    rscale = scale_ref[0]                       # (ts, 1) f32 (reduce_key_states rows)

    # rotate_half(x) == x @ R (signed permutation, precomputed in the wrapper).
    rot = jnp.dot(xf, rot_ref[...], preferred_element_type=jnp.float32)
    out = (xf * cos + rot * sin) * rscale
    if out_scale != 1.0:
        out = out * out_scale                   # fold 1/sqrt(D) into q once
    o_ref[...] = out[None, None].astype(o_ref.dtype)


def pallas_rope(qkv4, cos, sin, row_scale, rot_mat, *, head_offset, num_heads_out,
                out_scale=1.0, ts_target=512):
    """qkv4: (B, NHX, S, D) head-major QKV buffer; rotates heads
    [head_offset, head_offset + num_heads_out)."""
    B, NHX, S, D = qkv4.shape
    ts = _tile(S, ts_target, 8)
    kernel = functools.partial(_rope_kernel, out_scale=float(out_scale))
    return pl.pallas_call(
        kernel,
        out_shape=jax.ShapeDtypeStruct((B, num_heads_out, S, D), qkv4.dtype),
        grid=(B, num_heads_out, S // ts),
        in_specs=[
            pl.BlockSpec((1, 1, ts, D), lambda b, h, si: (b, h + head_offset, si, 0)),
            pl.BlockSpec((1, ts, D), lambda b, h, si: (b, si, 0)),
            pl.BlockSpec((1, ts, D), lambda b, h, si: (b, si, 0)),
            pl.BlockSpec((1, ts, 1), lambda b, h, si: (b, si, 0)),
            pl.BlockSpec((D, D), lambda b, h, si: (0, 0)),
        ],
        out_specs=pl.BlockSpec((1, 1, ts, D), lambda b, h, si: (b, h, si, 0)),
        compiler_params=pltpu.CompilerParams(
            dimension_semantics=("parallel", "parallel", "parallel")),
    )(qkv4, cos, sin, row_scale, rot_mat)


# ----------------------------- Flash attention kernel -----------------------------

def _flash_attn_kernel(q_ref, k_ref, v_ref, o_ref, m_sc, l_sc, acc_sc, *, tq, tk):
    ki = pl.program_id(3)
    q_start = pl.program_id(2) * tq
    k_start = ki * tk

    @pl.when(ki == 0)
    def _init():
        m_sc[...] = jnp.full(m_sc.shape, NEG_INF, m_sc.dtype)
        l_sc[...] = jnp.zeros_like(l_sc)
        acc_sc[...] = jnp.zeros_like(acc_sc)

    # Skip kv blocks strictly above the causal diagonal.
    @pl.when(k_start <= q_start + (tq - 1))
    def _compute():
        q = q_ref[0, 0]   # (tq, D), attn scale already folded in; native dtype for MXU
        k = k_ref[0, 0]   # (tk, D)
        v = v_ref[0, 0]   # (tk, D)

        # scores = q @ k.T (contract head_dim) in f32
        s = jax.lax.dot_general(q, k, (((1,), (1,)), ((), ())),
                                preferred_element_type=jnp.float32)   # (tq, tk)

        # in-kernel causal mask
        row = q_start + jax.lax.broadcasted_iota(jnp.int32, (tq, tk), 0)
        col = k_start + jax.lax.broadcasted_iota(jnp.int32, (tq, tk), 1)
        s = jnp.where(row >= col, s, NEG_INF)

        # online softmax (f32)
        m_prev = m_sc[...]
        m_new = jnp.maximum(m_prev, jnp.max(s, axis=-1, keepdims=True))
        alpha = jnp.exp(m_prev - m_new)
        p = jnp.exp(s - m_new)
        l_sc[...] = alpha * l_sc[...] + jnp.sum(p, axis=-1, keepdims=True)
        acc_sc[...] = alpha * acc_sc[...] + jnp.dot(
            p.astype(v.dtype), v, preferred_element_type=jnp.float32)
        m_sc[...] = m_new

    @pl.when(ki == pl.num_programs(3) - 1)
    def _finalize():
        inv_l = pl.reciprocal(l_sc[...], approx=True)
        o_ref[...] = (acc_sc[...] * inv_l)[None, None].astype(o_ref.dtype)
        # (attention_dropout: no-op, p=0 / inference)


def pallas_flash_attention(q, k, qkv4, *, num_kv_groups, v_head_offset,
                           tq_target=256, tk_target=512):
    """q: (B,NH,S,D) rotated; k: (B,NKV,S,D) rotated+scaled; V is read directly out of
    the head-major QKV buffer qkv4: (B,NHX,S,D).  Causal GQA attention -> (B,NH,S,D)."""
    B, NH, S, D = q.shape
    G = num_kv_groups
    tq = _tile(S, tq_target, 8)
    tk = _tile(S, tk_target, 8)
    kernel = functools.partial(_flash_attn_kernel, tq=tq, tk=tk)
    return pl.pallas_call(
        kernel,
        out_shape=jax.ShapeDtypeStruct((B, NH, S, D), q.dtype),
        grid=(B, NH, S // tq, S // tk),
        in_specs=[
            pl.BlockSpec((1, 1, tq, D), lambda b, h, qi, ki: (b, h, qi, 0)),
            pl.BlockSpec((1, 1, tk, D), lambda b, h, qi, ki: (b, h // G, ki, 0)),
            pl.BlockSpec((1, 1, tk, D),
                         lambda b, h, qi, ki: (b, v_head_offset + h // G, ki, 0)),
        ],
        out_specs=pl.BlockSpec((1, 1, tq, D), lambda b, h, qi, ki: (b, h, qi, 0)),
        scratch_shapes=[
            pltpu.VMEM((tq, 1), jnp.float32),   # m (running max)
            pltpu.VMEM((tq, 1), jnp.float32),   # l (running sum)
            pltpu.VMEM((tq, D), jnp.float32),   # acc
        ],
        compiler_params=pltpu.CompilerParams(
            dimension_semantics=("parallel", "parallel", "parallel", "arbitrary")),
    )(q, k, qkv4)


# ----------------------------- fused output projection -----------------------------

def _oproj_kernel(a_ref, w_ref, o_ref, acc_ref):
    @pl.when(pl.program_id(3) == 0)
    def _init():
        acc_ref[...] = jnp.zeros_like(acc_ref)

    acc_ref[...] += jnp.dot(a_ref[0, 0], w_ref[0],
                            preferred_element_type=jnp.float32)

    @pl.when(pl.program_id(3) == pl.num_programs(3) - 1)
    def _done():
        o_ref[...] = acc_ref[...][None].astype(o_ref.dtype)


def pallas_o_proj(attn, wo, *, tm_target=256, tn_target=256):
    """attn: (B, NH, S, D) consumed directly (head axis is the GEMM reduction);
    wo: (NH*D, H) -> output (B, S, H).  Replaces transpose(1,2).reshape + o_proj."""
    B, NH, S, D = attn.shape
    Hout = wo.shape[1]
    w3 = wo.reshape(NH, D, Hout)
    tm = _tile(S, tm_target, 8)
    tn = _tile(Hout, tn_target, 128)
    return pl.pallas_call(
        _oproj_kernel,
        out_shape=jax.ShapeDtypeStruct((B, S, Hout), attn.dtype),
        grid=(B, S // tm, Hout // tn, NH),
        in_specs=[
            pl.BlockSpec((1, 1, tm, D), lambda b, si, j, h: (b, h, si, 0)),
            pl.BlockSpec((1, D, tn), lambda b, si, j, h: (h, 0, j)),
        ],
        out_specs=pl.BlockSpec((1, tm, tn), lambda b, si, j, h: (b, si, j)),
        scratch_shapes=[pltpu.VMEM((tm, tn), jnp.float32)],
        compiler_params=pltpu.CompilerParams(
            dimension_semantics=("parallel", "parallel", "parallel", "arbitrary")),
    )(attn, w3)


# ----------------------------- Module forward (glue) -----------------------------

def _heads_first(w2d, n_heads, head_dim):
    # (H_in, n_heads*head_dim) -> (n_heads, H_in, head_dim); one-time weight prep.
    return jnp.transpose(w2d.reshape(w2d.shape[0], n_heads, head_dim), (1, 0, 2))


def my_llama_attention_forward(hidden_states, params, *, num_heads, num_kv_heads,
                               head_dim, rope_theta=10000.0, position_ids=None,
                               demonstration_intervals=None,
                               attention_reduction_ratio=None):
    B, S, H = hidden_states.shape
    G = num_heads // num_kv_heads
    x2d = hidden_states.reshape(B * S, H)

    # Fused q/k/v projection weight, stored head-major: (NH + 2*NKV, H, D).
    wqkv3 = jnp.concatenate(
        [_heads_first(params["wq"], num_heads, head_dim),
         _heads_first(params["wk"], num_kv_heads, head_dim),
         _heads_first(params["wv"], num_kv_heads, head_dim)], axis=0)

    qkv = pallas_qkv_proj(x2d, wqkv3, B, S)            # (B, NHX, S, D) head-major

    # LlamaRotaryEmbedding (default rope type, attention_scaling = 1.0)
    if position_ids is None:
        position_ids = jnp.broadcast_to(jnp.arange(S)[None, :], (B, S))
    inv_freq = 1.0 / (rope_theta ** (jnp.arange(0, head_dim, 2, dtype=jnp.float32)
                                     / head_dim))
    freqs = position_ids[..., None].astype(jnp.float32) * inv_freq[None, None, :]
    emb = jnp.concatenate([freqs, freqs], axis=-1)     # (B, S, D)
    cos = jnp.cos(emb)
    sin = jnp.sin(emb)

    # rotate_half(x) == x @ R (signed permutation), built once in the wrapper.
    half = head_dim // 2
    r = jnp.arange(head_dim)[:, None]
    c = jnp.arange(head_dim)[None, :]
    rot_mat = (jnp.where(r == c + half, -1.0, 0.0)
               + jnp.where(r + half == c, 1.0, 0.0)).astype(jnp.float32)

    # reduce_key_states -> per-batch key-row scale vector (ones == disabled path)
    key_scale = jnp.ones((B, S, 1), dtype=jnp.float32)
    if attention_reduction_ratio is not None and attention_reduction_ratio != 1.0:
        assert demonstration_intervals is not None
        pos = jnp.arange(S)
        rows = []
        for intervals in demonstration_intervals:
            s0, e0 = intervals[-1]
            rows.append(jnp.where((pos >= s0) & (pos < e0),
                                  attention_reduction_ratio, 1.0))
        key_scale = jnp.stack(rows)[..., None].astype(jnp.float32)
    ones = jnp.ones((B, S, 1), dtype=jnp.float32)

    # RoPE once per head; 1/sqrt(D) folded into q, key_scale folded into k.
    q_rot = pallas_rope(qkv, cos, sin, ones, rot_mat,
                        head_offset=0, num_heads_out=num_heads,
                        out_scale=1.0 / math.sqrt(head_dim))
    k_rot = pallas_rope(qkv, cos, sin, key_scale, rot_mat,
                        head_offset=num_heads, num_heads_out=num_kv_heads)

    attn = pallas_flash_attention(q_rot, k_rot, qkv, num_kv_groups=G,
                                  v_head_offset=num_heads + num_kv_heads)  # (B,NH,S,D)

    return pallas_o_proj(attn, params["wo"])           # (B, S, H)


# ----------------------------- Main -----------------------------

if __name__ == "__main__":
    B, S, H = 2, 8, 32         # batch, seq, hidden
    NH, NKV, D = 4, 2, 8       # heads, kv heads, head_dim  (NH*D == H)

    key = jax.random.PRNGKey(0)
    kx, kq, kk, kv, ko = jax.random.split(key, 5)
    hidden_states = jax.random.normal(kx, (B, S, H), dtype=jnp.float32)
    # Weights stored as (in_features, out_features) == PyTorch weight.T
    params = {
        "wq": 0.02 * jax.random.normal(kq, (H, NH * D), dtype=jnp.float32),
        "wk": 0.02 * jax.random.normal(kk, (H, NKV * D), dtype=jnp.float32),
        "wv": 0.02 * jax.random.normal(kv, (H, NKV * D), dtype=jnp.float32),
        "wo": 0.02 * jax.random.normal(ko, (NH * D, H), dtype=jnp.float32),
    }

    out = my_llama_attention_forward(
        hidden_states, params,
        num_heads=NH, num_kv_heads=NKV, head_dim=D, rope_theta=10000.0,
        demonstration_intervals=None, attention_reduction_ratio=None,
    )
    out = jax.block_until_ready(out)
    assert out.shape == (B, S, H) and out.dtype == jnp.float32

    # Pure-JAX reference (causal, no-cache path) to guard numerics.
    def reference(hidden, p):
        x = hidden.astype(jnp.float32)
        q = (x.reshape(B * S, H) @ p["wq"]).reshape(B, S, NH, D).transpose(0, 2, 1, 3)
        k = (x.reshape(B * S, H) @ p["wk"]).reshape(B, S, NKV, D).transpose(0, 2, 1, 3)
        v = (x.reshape(B * S, H) @ p["wv"]).reshape(B, S, NKV, D).transpose(0, 2, 1, 3)
        pos = jnp.arange(S, dtype=jnp.float32)
        inv_freq = 1.0 / (10000.0 ** (jnp.arange(0, D, 2, dtype=jnp.float32) / D))
        freqs = pos[:, None] * inv_freq[None, :]
        emb = jnp.concatenate([freqs, freqs], axis=-1)
        cos, sin = jnp.cos(emb)[None, None], jnp.sin(emb)[None, None]
        rh = lambda t: jnp.concatenate([-t[..., D // 2:], t[..., :D // 2]], axis=-1)
        q = q * cos + rh(q) * sin
        k = k * cos + rh(k) * sin
        k = jnp.repeat(k, NH // NKV, axis=1)
        v = jnp.repeat(v, NH // NKV, axis=1)
        s = jnp.einsum("bhqd,bhkd->bhqk", q, k) / math.sqrt(D)
        mask = jnp.tril(jnp.ones((S, S), dtype=bool))[None, None]
        s = jnp.where(mask, s, NEG_INF)
        o = jnp.einsum("bhqk,bhkd->bhqd", jax.nn.softmax(s, axis=-1), v)
        return (o.transpose(0, 2, 1, 3).reshape(B * S, NH * D) @ p["wo"]).reshape(B, S, H)

    ref = reference(hidden_states, params)
    assert jnp.allclose(out, ref, rtol=2e-2, atol=2e-4), \
        float(jnp.max(jnp.abs(out - ref)))
    print("KERNEL_OK")
</pallas_src>

<mosaic_0001>
module attributes {stable_mosaic.version = 11 : i64} {
  func.func @_qkv_kernel(%arg0: i32, %arg1: i32, %arg2: i32, %arg3: i32, %arg4: memref<8x32xf32, #tpu.memory_space<vmem>>, %arg5: memref<1x32x8xf32, #tpu.memory_space<vmem>>, %arg6: memref<1x1x8x8xf32, #tpu.memory_space<vmem>>, %arg7: memref<8x8xf32, #tpu.memory_space<vmem>>) attributes {dimension_semantics = [#tpu.dimension_semantics<parallel>, #tpu.dimension_semantics<parallel>, #tpu.dimension_semantics<parallel>, #tpu.dimension_semantics<arbitrary>], iteration_bounds = array<i64: 2, 1, 8, 1>, scalar_prefetch = 0 : i64, scratch_operands = 1 : i64, tpu.core_type = #tpu.core_type<tc>, window_params = [{transform_indices = @transform_0, window_bounds = array<i64: 8, 32>}, {transform_indices = @transform_1, window_bounds = array<i64: 1, 32, 8>}, {transform_indices = @transform_2, window_bounds = array<i64: 1, 1, 8, 8>}]} {
    %c0_i32 = arith.constant 0 : i32
    %0 = arith.cmpi eq, %arg3, %c0_i32 : i32
    %1 = arith.extui %0 : i1 to i32
    %c0_i32_0 = arith.constant 0 : i32
    %2 = arith.cmpi ne, %1, %c0_i32_0 : i32
    scf.if %2 {
      %cst_11 = arith.constant 0.000000e+00 : f32
      %13 = vector.broadcast %cst_11 : f32 to vector<8x8xf32>
      %c0_12 = arith.constant 0 : index
      %c0_13 = arith.constant 0 : index
      %14 = vector.load %arg7[%c0_12, %c0_13] : memref<8x8xf32, #tpu.memory_space<vmem>>, vector<8x8xf32>
      tpu.vector_store %arg7[%c0_12, %c0_13], %13 {strides = array<i32>} : memref<8x8xf32, #tpu.memory_space<vmem>>, vector<8x8xf32>,
    } else {
    }
    %c0 = arith.constant 0 : index
    %c0_1 = arith.constant 0 : index
    %3 = vector.load %arg7[%c0, %c0_1] : memref<8x8xf32, #tpu.memory_space<vmem>>, vector<8x8xf32>
    %c0_2 = arith.constant 0 : index
    %c0_3 = arith.constant 0 : index
    %4 = vector.load %arg4[%c0_2, %c0_3] : memref<8x32xf32, #tpu.memory_space<vmem>>, vector<8x32xf32>
    %c0_4 = arith.constant 0 : index
    %c0_5 = arith.constant 0 : index
    %c0_6 = arith.constant 0 : index
    %5 = vector.load %arg5[%c0_4, %c0_5, %c0_6] : memref<1x32x8xf32, #tpu.memory_space<vmem>>, vector<1x32x8xf32>
    %6 = vector.shape_cast %5 : vector<1x32x8xf32> to vector<32x8xf32>
    %cst = arith.constant dense<0.000000e+00> : vector<8x8xf32>
    %7 = tpu.matmul %4, %6, %cst {dimension_numbers = #tpu.dot_dimension_numbers<[1], [0], [0], [1], [0, 0, 1, 1], [], []>} : vector<8x32xf32>, vector<32x8xf32>, vector<8x8xf32> -> vector<8x8xf32>
    %8 = arith.addf %3, %7 : vector<8x8xf32>
    %c0_7 = arith.constant 0 : index
    %c0_8 = arith.constant 0 : index
    %9 = vector.load %arg7[%c0_7, %c0_8] : memref<8x8xf32, #tpu.memory_space<vmem>>, vector<8x8xf32>
    tpu.vector_store %arg7[%c0_7, %c0_8], %8 {strides = array<i32>} : memref<8x8xf32, #tpu.memory_space<vmem>>, vector<8x8xf32>,
    %c0_i32_9 = arith.constant 0 : i32
    %10 = arith.cmpi eq, %arg3, %c0_i32_9 : i32
    %11 = arith.extui %10 : i1 to i32
    %c0_i32_10 = arith.constant 0 : i32
    %12 = arith.cmpi ne, %11, %c0_i32_10 : i32
    scf.if %12 {
      %c0_11 = arith.constant 0 : index
      %c0_12 = arith.constant 0 : index
      %13 = vector.load %arg7[%c0_11, %c0_12] : memref<8x8xf32, #tpu.memory_space<vmem>>, vector<8x8xf32>
      %14 = vector.shape_cast %13 : vector<8x8xf32> to vector<1x1x8x8xf32>
      %c0_13 = arith.constant 0 : index
      %c0_14 = arith.constant 0 : index
      %c0_15 = arith.constant 0 : index
      %c0_16 = arith.constant 0 : index
      %15 = vector.load %arg6[%c0_13, %c0_14, %c0_15, %c0_16] : memref<1x1x8x8xf32, #tpu.memory_space<vmem>>, vector<1x1x8x8xf32>
      tpu.vector_store %arg6[%c0_13, %c0_14, %c0_15, %c0_16], %14 {strides = array<i32>} : memref<1x1x8x8xf32, #tpu.memory_space<vmem>>, vector<1x1x8x8xf32>,
    } else {
    }
    return
  }
  func.func @transform_0(%arg0: i32, %arg1: i32, %arg2: i32, %arg3: i32) -> (i32, i32) {
    %c1_i32 = arith.constant 1 : i32
    %0 = arith.muli %arg0, %c1_i32 : i32
    %1 = arith.addi %0, %arg1 : i32
    %c0_i32 = arith.constant 0 : i32
    return %1, %arg3 : i32, i32
  }
  func.func @transform_1(%arg0: i32, %arg1: i32, %arg2: i32, %arg3: i32) -> (i32, i32, i32) {
    %c0_i32 = arith.constant 0 : i32
    %c0_i32_0 = arith.constant 0 : i32
    return %arg2, %c0_i32, %arg3 : i32, i32, i32
  }
  func.func @transform_2(%arg0: i32, %arg1: i32, %arg2: i32, %arg3: i32) -> (i32, i32, i32, i32) {
    %c0_i32 = arith.constant 0 : i32
    %c0_i32_0 = arith.constant 0 : i32
    return %arg0, %arg2, %arg1, %c0_i32 : i32, i32, i32, i32
  }
}

</mosaic_0001>

<llo_original>
// kernel: tpu_custom_call.1
$region0: #{tpu_custom_call.1}
  #allocation0 [shape = 'u32[]', space=smem, size = 0x4, offset = 0x4, fixed_abs, tag = 'smem constant byte address 0x4 - core index']
  #allocation1 [shape = 'u32[144,128]{1,0:T(1,128)}', space=vmem, size = 0x12000, scoped, tag = 'internal scratch']
  #allocation2 [shape = 'f32[8,8]{1,0:T(8,128)}', space=vmem, size = 0x1000, scoped, tag = 'scratch operand']
  %s0 = inlined_call_operand.vmem [shape: f32[16,32], index: 0, kind: input, shape index: {}]
  %s1 = inlined_call_operand.vmem [shape: f32[8,32,8], index: 1, kind: input, shape index: {}]
  %s2 = inlined_call_operand.hbm [shape: f32[2,8,8,8], index: 2, kind: output, shape index: {}]
  %s3 = sld [smem:[#allocation0]]
  $region49: #{tpu_custom_call.1} parent=0
    _
  %s5 = ssub.s32 1, %s3
  %s6 = scalar_select 0, %s5, %s3
  $region1: #{tpu_custom_call.1} parent=0
    #allocation3 [shape = 'u8[8192]{0}', space=vmem, size = 0x2000, scoped, tag = 'output window, operand 0']
    #allocation4 [shape = 's32[2]{0}', space=sflag, size = 0x8, scoped, tag = 'scoped memory for tpu_custom_call.1']
    %7 = vsyncpa [#allocation4], 0
    %s8 = scalar_lea.sflag [#allocation4], 1
    %9 = vsyncpa %s8, 0
    loop: start=0, step=1, limit=18
    $region2: #{tpu_custom_call.1} parent=1 // loop_pre_header
      _
    $region3: #{tpu_custom_call.1} parent=1 // loop_header
      %s11 = sphi 0, %s15
      %p12 = scmp.ge.s32.totalorder %s11, 18
      %s18 = sphi 0, %s44
      %s19 = sphi 0, %s40
      %s20 = sphi 0, %s36
      %s21 = sphi 0, %s32
      %s22 = sphi 0, %s18
      %s23 = sphi 0, %s19
      %s24 = sphi 0, %s20
      %s25 = sphi 0, %s21
      %s26 = sphi 0, %s22
      %s27 = sphi 0, %s23
      %s28 = sphi 0, %s24
      %s29 = sphi 0, %s25
      %s51 = sphi 0, %s53
      %s54 = sphi 0, %s51
      %s55 = sphi 0, %s54
      %s71 = sphi 0, %s55
      %s79 = sphi 0, %s81
      %s82 = sphi 0, %s79
      %s83 = sphi 0, %s82
      %s99 = sphi 0, %s83
      %s109 = sphi 0, %s111
      %s112 = sphi 0, %s109
      %s113 = sphi 0, %s112
      %s129 = sphi 0, %s113
    $region4: #{tpu_custom_call.1} parent=1 // loop_header_branch
      %14 = sbr.rel (%p12) target = $region8
    $region5: #{tpu_custom_call.1} parent=1 // loop_body
      %s16 = ssub.s32 %s11, 1
      %s17 = ssub.s32 %s11, 2
      %s30 = sadd.s32 1, %s21
      %p31 = scmp.ge.s32.totalorder %s30, 1
      %s32 = scalar_select %p31, 0, %s30
      %s33 = sadd.s32 1, %s20
      %s34 = scalar_select %p31, %s33, %s20
      %p35 = scmp.ge.s32.totalorder %s34, 8
      %s36 = scalar_select %p35, 0, %s34
      %s37 = sadd.s32 1, %s19
      %s38 = scalar_select %p35, %s37, %s19
      %p39 = scmp.ge.s32.totalorder %s38, 1
      %s40 = scalar_select %p39, 0, %s38
      %s41 = sadd.s32 1, %s18
      %s42 = scalar_select %p39, %s41, %s18
      %p43 = scmp.ge.s32.totalorder %s42, 2
      %s44 = scalar_select %p43, 0, %s42
      %s45 = sadd.s32 %s18, %s19
      %s46 = sadd.s32 %s44, %s40
      %s47 = ssub.s32 %s45, %s46
      %s48 = ssub.s32 %s21, %s32
      %s49 = sor.u32 %s47, %s48
      %p50 = scmp.eq.s32.totalorder %s49, 0
      %s52 = sadd.s32 %s51, 1
      %s53 = scalar_select %p50, %s51, %s52
      %p56 = pneg %p50
      %p57 = scmp.eq.s32.totalorder %s11, 15
      %p58 = por %p56, %p57
      %p59 = scmp.ne.s32.totalorder %s51, %s54
      %p60 = scmp.eq.s32.totalorder %s11, 0
      %p61 = por %p59, %p60
      %p62 = scmp.ne.s32.totalorder %s51, %s54
      %p63 = scmp.eq.s32.totalorder %s16, 15
      %p64 = por %p62, %p63
      %p65 = scmp.ne.s32.totalorder %s54, %s55
      %p66 = scmp.eq.s32.totalorder %s16, 0
      %p67 = por %p65, %p66
      %p68 = scmp.ne.s32.totalorder %s54, %s55
      %p69 = scmp.eq.s32.totalorder %s17, 15
      %p70 = por %p68, %p69
      %p72 = scmp.ne.s32.totalorder %s55, %s71
      %p73 = scmp.eq.s32.totalorder %s17, 0
      %p74 = por %p72, %p73
      %s75 = ssub.s32 %s20, %s36
      %s76 = ssub.s32 %s21, %s32
      %s77 = sor.u32 %s75, %s76
      %p78 = scmp.eq.s32.totalorder %s77, 0
      %s80 = sadd.s32 %s79, 1
      %s81 = scalar_select %p78, %s79, %s80
      %p84 = pneg %p78
      %p85 = scmp.eq.s32.totalorder %s11, 15
      %p86 = por %p84, %p85
      %p87 = scmp.ne.s32.totalorder %s79, %s82
      %p88 = scmp.eq.s32.totalorder %s11, 0
      %p89 = por %p87, %p88
      %p90 = scmp.ne.s32.totalorder %s79, %s82
      %p91 = scmp.eq.s32.totalorder %s16, 15
      %p92 = por %p90, %p91
      %p93 = scmp.ne.s32.totalorder %s82, %s83
      %p94 = scmp.eq.s32.totalorder %s16, 0
      %p95 = por %p93, %p94
      %p96 = scmp.ne.s32.totalorder %s82, %s83
      %p97 = scmp.eq.s32.totalorder %s17, 15
      %p98 = por %p96, %p97
      %p100 = scmp.ne.s32.totalorder %s83, %s99
      %p101 = scmp.eq.s32.totalorder %s17, 0
      %p102 = por %p100, %p101
      %s103 = ssub.s32 %s18, %s44
      %s104 = ssub.s32 %s20, %s36
      %s105 = sor.u32 %s103, %s104
      %s106 = ssub.s32 %s19, %s40
      %s107 = sor.u32 %s105, %s106
      %p108 = scmp.eq.s32.totalorder %s107, 0
      %s110 = sadd.s32 %s109, 1
      %s111 = scalar_select %p108, %s109, %s110
      %p114 = pneg %p108
      %p115 = scmp.eq.s32.totalorder %s11, 15
      %p116 = por %p114, %p115
      %p117 = scmp.ne.s32.totalorder %s109, %s112
      %p118 = scmp.eq.s32.totalorder %s11, 0
      %p119 = por %p117, %p118
      %p120 = scmp.ne.s32.totalorder %s109, %s112
      %p121 = scmp.eq.s32.totalorder %s16, 15
      %p122 = por %p120, %p121
      %p123 = scmp.ne.s32.totalorder %s112, %s113
      %p124 = scmp.eq.s32.totalorder %s16, 0
      %p125 = por %p123, %p124
      %p126 = scmp.ne.s32.totalorder %s112, %s113
      %p127 = scmp.eq.s32.totalorder %s17, 15
      %p128 = por %p126, %p127
      %p130 = scmp.ne.s32.totalorder %s113, %s129
      %p131 = scmp.eq.s32.totalorder %s17, 0
      %p132 = por %p130, %p131
      %p133 = scmp.le.s32.totalorder 1, %s11
      %p134 = scmp.lt.s32.totalorder %s11, 17
      %p135 = pnand %p133, %p134
      %p136 = pneg %p135
      // Predicated region
      $region9: #{tpu_custom_call.1} parent=5 // pred_check
        _
      $region10: #{tpu_custom_call.1} parent=5 // pred_check_branch
        %138 = sbr.rel (%p135) target = $region12
      $region11: #{tpu_custom_call.1} parent=5 // pred_region
        %s139 = ssub.s32 %s11, 1
      $region12: #{tpu_custom_call.1} parent=5 // pred_fallthru
        _
      %p140 = scmp.lt.s32.totalorder %s11, 16
      // Predicated region
      $region13: #{tpu_custom_call.1} parent=5 // pred_check
        %p141 = pneg %p140
      $region14: #{tpu_custom_call.1} parent=5 // pred_check_branch
        %143 = sbr.rel (%p141) target = $region16
      $region15: #{tpu_custom_call.1} parent=5 // pred_region
        // Predicated region
        $region17: #{tpu_custom_call.1} parent=15 // pred_check
          %p144 = pneg %p61
        $region18: #{tpu_custom_call.1} parent=15 // pred_check_branch
          %146 = sbr.rel (%p144) target = $region20
        $region19: #{tpu_custom_call.1} parent=15 // pred_region
          %s147 = sadd.s32 %s18, %s19
          %p148 = scmp.lt.s32.totalorder %s147, 1
          %s149 = scalar_select %p148, %s147, 1
          %p150 = scmp.lt.s32.totalorder %s21, 0
          %s151 = scalar_select %p150, %s21, 0
          %s152 = sadd.s32 %s151, %s149
          %s153 = smul.addr %s152, 8
          %s154 = scalar_lea.vmem %s0, %s153
          %s155 = sadd.s32 %s18, %s19
        $region20: #{tpu_custom_call.1} parent=15 // pred_fallthru
          _
        // Predicated region
        $region21: #{tpu_custom_call.1} parent=15 // pred_check
          %p156 = pneg %p89
        $region22: #{tpu_custom_call.1} parent=15 // pred_check_branch
          %158 = sbr.rel (%p156) target = $region24
        $region23: #{tpu_custom_call.1} parent=15 // pred_region
          %p159 = scmp.lt.s32.totalorder %s20, 7
          %s160 = scalar_select %p159, %s20, 7
          %p161 = scmp.lt.s32.totalorder %s21, 0
          %s162 = scalar_select %p161, %s21, 0
          %s163 = smul.addr %s160, 4
          %s164 = sadd.s32 %s162, %s163
          %s165 = smul.addr %s164, 8
          %s166 = scalar_lea.vmem %s1, %s165
        $region24: #{tpu_custom_call.1} parent=15 // pred_fallthru
          _
      $region16: #{tpu_custom_call.1} parent=5 // pred_fallthru
        _
      %p167 = scmp.le.s32.totalorder 1, %s11
      %p168 = scmp.lt.s32.totalorder %s11, 17
      %p169 = pnand %p167, %p168
      %p170 = pneg %p169
      // Predicated region
      $region25: #{tpu_custom_call.1} parent=5 // pred_check
        _
      $region26: #{tpu_custom_call.1} parent=5 // pred_check_branch
        %172 = sbr.rel (%p169) target = $region28
      $region27: #{tpu_custom_call.1} parent=5 // pred_region
        %s173 = ssub.s32 %s11, 1
        %s174 = sadd.s32 %s22, %s23
        %p175 = scmp.lt.s32.totalorder %s174, 1
        %s176 = scalar_select %p175, %s174, 1
        %p177 = scmp.lt.s32.totalorder %s25, 0
        %s178 = scalar_select %p177, %s25, 0
        %s179 = sadd.s32 %s178, %s176
        %s180 = smul.addr %s179, 8
        %s181 = scalar_lea.vmem %s0, %s180
        %p182 = pneg %p67
        %p183 = pneg %p64
        %p184 = scmp.lt.s32.totalorder %s24, 7
        %s185 = scalar_select %p184, %s24, 7
        %p186 = scmp.lt.s32.totalorder %s25, 0
        %s187 = scalar_select %p186, %s25, 0
        %s188 = smul.addr %s185, 4
        %s189 = sadd.s32 %s187, %s188
        %s190 = smul.addr %s189, 8
        %s191 = scalar_lea.vmem %s1, %s190
        %p192 = pneg %p95
        %p193 = pneg %p92
        %p194 = pneg %p125
        %p195 = pneg %p122
        %s196 = sand.u32 %s112, 1
        %s197 = scalar_lea.sflag [#allocation4], %s196
        %s198 = sand.u32 %s112, 1
        %s199 = smul.addr %s198, 8
        %s200 = scalar_lea.vmem [#allocation3], %s199
        %s201 = sadd.s32 %s22, %s23
        %p202 = scmp.lt.s32.totalorder %s201, 1
        %s203 = scalar_select %p202, %s201, 1
        %p204 = scmp.lt.s32.totalorder %s25, 0
        %s205 = scalar_select %p204, %s25, 0
        %s206 = sadd.s32 %s205, %s203
        %s207 = smul.addr %s206, 8
        %s208 = scalar_lea.vmem %s0, %s207
        %s209 = sadd.s32 %s22, %s23
        %p210 = scmp.lt.s32.totalorder %s24, 7
        %s211 = scalar_select %p210, %s24, 7
        %p212 = scmp.lt.s32.totalorder %s25, 0
        %s213 = scalar_select %p212, %s25, 0
        %s214 = smul.addr %s211, 4
        %s215 = sadd.s32 %s213, %s214
        %s216 = smul.addr %s215, 8
        %s217 = scalar_lea.vmem %s1, %s216
        %p218 = scmp.eq.s32.totalorder %s25, 0
        // Predicated region
        $region29: #{tpu_custom_call.1} parent=27 // pred_check
          %p219 = pneg %p218
        $region30: #{tpu_custom_call.1} parent=27 // pred_check_branch
          %221 = sbr.rel (%p219) target = $region32
        $region31: #{tpu_custom_call.1} parent=27 // pred_region
          %vm222 = vcmask 64512
          %223 = vst.msk [vmem:[#allocation2] sm:$0xff] %vm222, 0.0
        $region32: #{tpu_custom_call.1} parent=27 // pred_fallthru
          _
        %v224 = vld [vmem:[#allocation2] sm:$0xff]
        %v225 = vld [vmem:[%s208] sm:$0xff]
        %v226 = vld [vmem:[%s217] sm:$0xff]
        %v227 = vld [vmem:[%s217 + $0x8] sm:$0xff]
        %v228 = vld [vmem:[%s217 + $0x10] sm:$0xff]
        %v229 = vld [vmem:[%s217 + $0x18] sm:$0xff]
        %vm230 = vcmask 261120
        %v232 = vsel %vm230, %v225, 0
        %234 = vmatprep.subr.mxu0 0.0
        %235 = vmatpush1.msra.mxu0 %v226
        %236 = vmatprep.subr.mxu0 0.0
        %237 = vmatpush1.msra.mxu0 %v227
        %238 = vmatprep.subr.mxu0 0.0
        %239 = vmatpush1.msra.mxu0 %v228
        %240 = vmatprep.subr.mxu0 0.0
        %241 = vmatpush1.msra.mxu0 %v229
        %242 = vmatprep.subr.mxu0 0.0
        %243 = vmatpush1.msra.mxu0 0.0
        %244 = vmatprep.subr.mxu0 0.0
        %245 = vmatpush1.msra.mxu0 0.0
        %246 = vmatprep.subr.mxu0 0.0
        %247 = vmatpush1.msra.mxu0 0.0
        %248 = vmatprep.subr.mxu0 0.0
        %249 = vmatpush1.msra.mxu0 0.0
        %250 = vmatprep.subr.mxu0 0.0
        %251 = vmatpush1.msra.mxu0 0.0
        %252 = vmatprep.subr.mxu0 0.0
        %253 = vmatpush1.msra.mxu0 0.0
        %254 = vmatprep.subr.mxu0 0.0
        %255 = vmatpush1.msra.mxu0 0.0
        %256 = vmatprep.subr.mxu0 0.0
        %257 = vmatpush1.msra.mxu0 0.0
        %258 = vmatprep.subr.mxu0 0.0
        %259 = vmatpush1.msra.mxu0 0.0
        %260 = vmatprep.subr.mxu0 0.0
        %261 = vmatpush1.msra.mxu0 0.0
        %262 = vmatprep.subr.mxu0 0.0
        %263 = vmatpush1.msra.mxu0 0.0
        %264 = vmatprep.subr.mxu0 0.0
        %265 = vmatpush1.msra.mxu0 0.0
        %266 = vmatprep.subr.mxu0 0.0
        %267 = vmatpush1.msra.mxu0 0.0
        %268 = vmatprep.subr.mxu0 0.0
        %269 = vmatpush1.msra.mxu0 0.0
        %270 = vmatprep.subr.mxu0 0.0
        %271 = vmatpush1.msra.mxu0 0.0
        %272 = vmatprep.subr.mxu0 0.0
        %273 = vmatpush1.msra.mxu0 0.0
        %274 = vmatprep.subr.mxu0 0.0
        %275 = vmatpush1.msra.mxu0 0.0
        %276 = vmatprep.subr.mxu0 0.0
        %277 = vmatpush1.msra.mxu0 0.0
        %278 = vmatprep.subr.mxu0 0.0
        %279 = vmatpush1.msra.mxu0 0.0
        %280 = vmatprep.subr.mxu0 0.0
        %281 = vmatpush1.msra.mxu0 0.0
        %282 = vmatprep.subr.mxu0 0.0
        %283 = vmatpush1.msra.mxu0 0.0
        %284 = vmatprep.subr.mxu0 0.0
        %285 = vmatpush1.msra.mxu0 0.0
        %286 = vmatprep.subr.mxu0 0.0
        %287 = vmatpush1.msra.mxu0 0.0
        %288 = vmatprep.subr.mxu0 0.0
        %289 = vmatpush1.msra.mxu0 0.0
        %290 = vmatprep.subr.mxu0 0.0
        %291 = vmatpush1.msra.mxu0 0.0
        %292 = vmatprep.subr.mxu0 0.0
        %293 = vmatpush1.msra.mxu0 0.0
        %294 = vmatprep.subr.mxu0 0.0
        %295 = vmatpush1.msra.mxu0 0.0
        %296 = vmatprep.subr.mxu0 0.0
        %297 = vmatpush1.msra.mxu0 0.0
        %298 = vmatprep.mubr.f32.mxu0 0.0
        %299 = vmatmul.mubr.f32.gmra.mrb[0].mxu0 %v232
        %v300 = vpop.f32.mrb[0].mxu0
        %v301 = vadd.f32 0.0, %v300
        %v302 = vpop.f32.mrb[0].mxu0
        %303 = vdwg.mxu0
        %v304 = vadd.f32 %v224, %v301
        %vm305 = vcmask 64512
        %306 = vst.msk [vmem:[#allocation2] sm:$0xff] %vm305, %v304
        // Predicated region
        $region33: #{tpu_custom_call.1} parent=27 // pred_check
          %p307 = pneg %p218
        $region34: #{tpu_custom_call.1} parent=27 // pred_check_branch
          %309 = sbr.rel (%p307) target = $region36
        $region35: #{tpu_custom_call.1} parent=27 // pred_region
          %v310 = vld [vmem:[#allocation2] sm:$0xff]
          %311 = vst.msk [vmem:[%s200] sm:$0xff] %vm305, %v310
        $region36: #{tpu_custom_call.1} parent=27 // pred_fallthru
          _
        %s312 = sand.u32 %s112, 1
        %s313 = scalar_lea.sflag [#allocation4], %s312
        %s314 = sand.u32 %s112, 1
        %s315 = smul.addr %s314, 8
        %s316 = scalar_lea.vmem [#allocation3], %s315
        // Predicated region
        $region37: #{tpu_custom_call.1} parent=27 // pred_check
          %p317 = pneg %p122
        $region38: #{tpu_custom_call.1} parent=27 // pred_check_branch
          %319 = sbr.rel (%p317) target = $region40
        $region39: #{tpu_custom_call.1} parent=27 // pred_region
          %s321 = ssub.s32 128, 128
          %322 = vsyncadd %s313, %s321
          %s323 = sadd.s32 %s23, %s24
          %s324 = smul.addr %s22, 8
          %s325 = sadd.s32 %s323, %s324
          %s326 = smul.addr %s325, 128
          %s327 = scalar_lea.hbm %s2, %s326
          %s329 = sshll.u32 %s316, 4
          %s330 = int_to_ptr.vmem [resolvable:$true] %s329
          %332 = dma.vmem_to_hbm [thread:$0]  %s330, 128, %s327, %s313
        $region40: #{tpu_custom_call.1} parent=27 // pred_fallthru
          _
      $region28: #{tpu_custom_call.1} parent=5 // pred_fallthru
        _
      %p333 = scmp.le.s32.totalorder 2, %s11
      // Predicated region
      $region41: #{tpu_custom_call.1} parent=5 // pred_check
        %p334 = pneg %p333
      $region42: #{tpu_custom_call.1} parent=5 // pred_check_branch
        %336 = sbr.rel (%p334) target = $region44
      $region43: #{tpu_custom_call.1} parent=5 // pred_region
        %s337 = ssub.s32 %s11, 2
        // Predicated region
        $region45: #{tpu_custom_call.1} parent=43 // pred_check
          %p338 = pneg %p128
        $region46: #{tpu_custom_call.1} parent=43 // pred_check_branch
          %340 = sbr.rel (%p338) target = $region48
        $region47: #{tpu_custom_call.1} parent=43 // pred_region
          %s341 = sand.u32 %s113, 1
          %s342 = scalar_lea.sflag [#allocation4], %s341
          %s343 = sand.u32 %s113, 1
          %s344 = smul.addr %s343, 8
          %s345 = scalar_lea.vmem [#allocation3], %s344
          %346 = dma.done %s342, 128
        $region48: #{tpu_custom_call.1} parent=43 // pred_fallthru
          _
      $region44: #{tpu_custom_call.1} parent=5 // pred_fallthru
        _
    $region6: #{tpu_custom_call.1} parent=1 // loop_footer
      %s15 = sadd.s32 1, %s11
    $region7: #{tpu_custom_call.1} parent=1 // loop_footer_branch
      %10 = sbr.rel target = $region3
    $region8: #{tpu_custom_call.1} parent=1 // loop_exit
      _
    %347 = vsyncpa [#allocation4], 1
    %s348 = scalar_lea.sflag [#allocation4], 1
    %349 = vsyncpa %s348, 1

</llo_original>
